<compile_context>
chip_gen: v6e
topology: v6e:2x2x1
jax: 0.10.0
libtpu: 0.0.40
codegen_flags: <defaults>
</compile_context>

<pallas_src>
import jax
import jax.numpy as jnp
from jax.experimental import pallas as pl
from jax.experimental.pallas import tpu as pltpu


def _round_up(x, m):
    return ((x + m - 1) // m) * m


# ---------------------------------------------------------------------------
# Kernel
# ---------------------------------------------------------------------------
def _fused_head_kernel(
    x_ref,      # (TB, E)    bf16  fused [video|audio|eeg] features
    wbig_ref,   # (E, 256)   bf16  folded Wv@Wo@Wfc@W1
    bbig_ref,   # (1, 256)   f32   folded bias
    w2_ref,     # (256, Cp)  bf16  fc2 (transposed, lane-padded to Cp=128k)
    b2_ref,     # (1, Cp)    f32
    out_ref,    # (TB, Cp)   bf16  lane-dense logits slab
):
    # h1 = relu(x @ W_big + b_big)   — single MXU pass, f32 accumulation.
    h1 = jnp.dot(x_ref[...], wbig_ref[...],
                 preferred_element_type=jnp.float32) + bbig_ref[...]
    h1 = jnp.maximum(h1, 0.0)

    # Dropout(0.5) is identity in eval mode.
    # TODO(synk): training-mode dropout (stateful PRNG mask) not implemented.

    # fc2 (256 -> num_classes), lane-padded; bf16 writeback (unmasked vst).
    out = jnp.dot(h1.astype(jnp.bfloat16), w2_ref[...],
                  preferred_element_type=jnp.float32) + b2_ref[...]
    out_ref[...] = out.astype(out_ref.dtype)


# ---------------------------------------------------------------------------
# Wrapper
# ---------------------------------------------------------------------------
def _choose_tiling(batch):
    """Return (tile_rows, padded_batch).

    Large sublane-friendly tiles; >=2 grid steps whenever the batch allows so
    dimension_semantics=('parallel',) can shard across v7x's two TensorCores.
    """
    if batch <= 128:
        bp = max(8, _round_up(batch, 8))
        return bp, bp                       # single full-extent block
    bp = _round_up(batch, 128)
    for tb in (1024, 512, 256, 128):
        if bp % tb == 0 and bp // tb >= 2:
            return tb, bp
    return 128, bp


def multimodal_emotion_forward(video_feat, audio_feat, eeg_feat, prep):
    B = video_feat.shape[0]
    E, H1 = prep["w_big"].shape             # (48, 256)
    c_pad = prep["w2_t"].shape[1]           # lane-padded classes (128)
    C = prep["num_classes"]

    # torch.cat + bf16 cast fused into one XLA op → single compact bf16 slab.
    x = jnp.concatenate([video_feat, audio_feat, eeg_feat],
                        axis=-1).astype(jnp.bfloat16)

    tb, bp = _choose_tiling(B)
    if bp != B:
        x = jnp.pad(x, ((0, bp - B), (0, 0)))   # zero rows; sliced off below

    grid = (bp // tb,)

    in_specs = [
        pl.BlockSpec((tb, E), lambda i: (i, 0)),                    # batch-tiled
        pl.BlockSpec(prep["w_big"].shape, lambda i: (0, 0)),        # VMEM-resident
        pl.BlockSpec(prep["b_big"].shape, lambda i: (0, 0)),
        pl.BlockSpec(prep["w2_t"].shape, lambda i: (0, 0)),
        pl.BlockSpec(prep["b2"].shape, lambda i: (0, 0)),
    ]
    out_spec = pl.BlockSpec((tb, c_pad), lambda i: (i, 0))

    flops = 2 * bp * (E * H1 + H1 * c_pad)
    bytes_accessed = (
        x.size * x.dtype.itemsize
        + sum(prep[k].size * prep[k].dtype.itemsize
              for k in ("w_big", "b_big", "w2_t", "b2"))
        + bp * c_pad * 2)                                           # bf16 output

    out_padded = pl.pallas_call(
        _fused_head_kernel,
        out_shape=jax.ShapeDtypeStruct((bp, c_pad), jnp.bfloat16),
        grid=grid,
        in_specs=in_specs,
        out_specs=out_spec,
        compiler_params=pltpu.CompilerParams(
            dimension_semantics=("parallel",)),
        cost_estimate=pl.CostEstimate(
            flops=flops, transcendentals=0, bytes_accessed=bytes_accessed),
    )(x, prep["w_big"], prep["b_big"], prep["w2_t"], prep["b2"])

    return out_padded[:B, :C].astype(jnp.float32)


# ---------------------------------------------------------------------------
# Parameter construction (raw layers -> folded / cast / padded kernel params)
# ---------------------------------------------------------------------------
def init_raw_params(key, embed_dim, num_classes):
    """Synthetic per-layer params matching the PyTorch module (transposed)."""
    ks = jax.random.split(key, 10)

    def lin(kw, kb, fan_in, fan_out):
        w = jax.random.normal(kw, (fan_in, fan_out), jnp.float32) * (1.0 / jnp.sqrt(fan_in))
        b = jax.random.normal(kb, (1, fan_out), jnp.float32) * 0.01
        return w, b

    wv_t, bv = lin(ks[0], ks[1], embed_dim, embed_dim)   # MHA in_proj value slice
    wo_t, bo = lin(ks[2], ks[3], embed_dim, embed_dim)   # MHA out_proj
    wfc_t, bfc = lin(ks[4], ks[5], embed_dim, 512)       # SelfAttentionFusion.fc
    w1_t, b1 = lin(ks[6], ks[7], 512, 256)               # fc1
    w2_t, b2 = lin(ks[8], ks[9], 256, num_classes)       # fc2
    return dict(wv_t=wv_t, bv=bv, wo_t=wo_t, bo=bo, wfc_t=wfc_t, bfc=bfc,
                w1_t=w1_t, b1=b1, w2_t=w2_t, b2=b2)


def prepare_params(raw, num_classes):
    """Exact algebraic fold (V_proj ∘ out_proj ∘ fusion.fc ∘ fc1) + bf16 cast +
    lane padding — done once, offline, in f32."""
    w_big = raw["wv_t"] @ raw["wo_t"] @ raw["wfc_t"] @ raw["w1_t"]            # (E, 256)
    b_big = (((raw["bv"] @ raw["wo_t"] + raw["bo"]) @ raw["wfc_t"] + raw["bfc"])
             @ raw["w1_t"] + raw["b1"])                                       # (1, 256)

    c_pad = max(128, _round_up(num_classes, 128))
    w2_pad = jnp.zeros((raw["w2_t"].shape[0], c_pad), jnp.float32)
    w2_pad = w2_pad.at[:, :num_classes].set(raw["w2_t"])
    b2_pad = jnp.zeros((1, c_pad), jnp.float32).at[:, :num_classes].set(raw["b2"])

    return dict(
        w_big=w_big.astype(jnp.bfloat16),
        b_big=b_big,                                   # keep bias epilogues f32
        w2_t=w2_pad.astype(jnp.bfloat16),
        b2=b2_pad,
        num_classes=num_classes,
    )


# ---------------------------------------------------------------------------
# References
# ---------------------------------------------------------------------------
def reference_matched(video, audio, eeg, prep):
    """Plain-JAX reference with the same precision path as the kernel."""
    x = jnp.concatenate([video, audio, eeg], axis=-1).astype(jnp.bfloat16)
    h1 = jnp.maximum(
        jnp.dot(x, prep["w_big"], preferred_element_type=jnp.float32)
        + prep["b_big"], 0.0)
    out = jnp.dot(h1.astype(jnp.bfloat16), prep["w2_t"],
                  preferred_element_type=jnp.float32) + prep["b2"]
    out = out.astype(jnp.bfloat16)
    return out[:, :prep["num_classes"]].astype(jnp.float32)


def reference_f32(video, audio, eeg, raw):
    """Unfolded f32 reference of the original module math (eval mode)."""
    x = jnp.concatenate([video, audio, eeg], axis=-1)
    v = x @ raw["wv_t"] + raw["bv"]                      # MHA value proj
    a = v @ raw["wo_t"] + raw["bo"]                      # MHA out proj (softmax==1)
    h = a @ raw["wfc_t"] + raw["bfc"]                    # fusion.fc
    h1 = jnp.maximum(h @ raw["w1_t"] + raw["b1"], 0.0)   # fc1 + relu
    return h1 @ raw["w2_t"] + raw["b2"]                  # fc2


# ---------------------------------------------------------------------------
# Self-test
# ---------------------------------------------------------------------------
if __name__ == "__main__":
    VIDEO_D, AUDIO_D, EEG_D = 24, 16, 8      # embed_dim = 48 (divisible by 4 heads)
    EMBED_DIM = VIDEO_D + AUDIO_D + EEG_D
    NUM_CLASSES = 6

    key = jax.random.PRNGKey(0)
    k_data, k_p = jax.random.split(key)

    raw = init_raw_params(k_p, EMBED_DIM, NUM_CLASSES)
    prep = prepare_params(raw, NUM_CLASSES)

    # B=8   -> single full-extent block path
    # B=260 -> padded (384) multi-step grid path (3 x 128-row tiles)
    for B in (8, 260):
        kv, ka, ke = jax.random.split(jax.random.fold_in(k_data, B), 3)
        video_feat = jax.random.normal(kv, (B, VIDEO_D), jnp.float32)
        audio_feat = jax.random.normal(ka, (B, AUDIO_D), jnp.float32)
        eeg_feat = jax.random.normal(ke, (B, EEG_D), jnp.float32)

        out = multimodal_emotion_forward(video_feat, audio_feat, eeg_feat, prep)
        out = jax.block_until_ready(out)
        assert out.shape == (B, NUM_CLASSES)

        # Kernel vs matched-precision (bf16-in / f32-acc / bf16-out) reference.
        ref_m = reference_matched(video_feat, audio_feat, eeg_feat, prep)
        assert jnp.allclose(out, ref_m, atol=2e-2, rtol=2e-2), "mismatch vs matched ref"

        # Kernel vs full-precision unfolded module math: loose check (bf16 params).
        ref_f = reference_f32(video_feat, audio_feat, eeg_feat, raw)
        assert float(jnp.max(jnp.abs(out - ref_f))) < 0.25, "mismatch vs f32 module reference"

    print("KERNEL_OK")
</pallas_src>

<mosaic_0001>
module attributes {stable_mosaic.version = 11 : i64} {
  func.func @_fused_head_kernel(%arg0: i32, %arg1: memref<8x48xbf16, #tpu.memory_space<vmem>>, %arg2: memref<48x256xbf16, #tpu.memory_space<vmem>>, %arg3: memref<1x256xf32, #tpu.memory_space<vmem>>, %arg4: memref<256x128xbf16, #tpu.memory_space<vmem>>, %arg5: memref<1x128xf32, #tpu.memory_space<vmem>>, %arg6: memref<8x128xbf16, #tpu.memory_space<vmem>>) attributes {dimension_semantics = [#tpu.dimension_semantics<parallel>], iteration_bounds = array<i64: 1>, scalar_prefetch = 0 : i64, scratch_operands = 0 : i64, tpu.core_type = #tpu.core_type<tc>, window_params = [{transform_indices = @transform_0, window_bounds = array<i64: 8, 48>}, {pipeline_mode = #tpu.pipeline_mode<synchronous>, transform_indices = @transform_1, window_bounds = array<i64: 48, 256>}, {pipeline_mode = #tpu.pipeline_mode<synchronous>, transform_indices = @transform_2, window_bounds = array<i64: 1, 256>}, {pipeline_mode = #tpu.pipeline_mode<synchronous>, transform_indices = @transform_3, window_bounds = array<i64: 256, 128>}, {pipeline_mode = #tpu.pipeline_mode<synchronous>, transform_indices = @transform_4, window_bounds = array<i64: 1, 128>}, {transform_indices = @transform_5, window_bounds = array<i64: 8, 128>}]} {
    %c0 = arith.constant 0 : index
    %c0_0 = arith.constant 0 : index
    %0 = vector.load %arg1[%c0, %c0_0] : memref<8x48xbf16, #tpu.memory_space<vmem>>, vector<8x48xbf16>
    %c0_1 = arith.constant 0 : index
    %c0_2 = arith.constant 0 : index
    %1 = vector.load %arg2[%c0_1, %c0_2] : memref<48x256xbf16, #tpu.memory_space<vmem>>, vector<48x256xbf16>
    %cst = arith.constant dense<0.000000e+00> : vector<8x256xf32>
    %2 = tpu.matmul %0, %1, %cst {dimension_numbers = #tpu.dot_dimension_numbers<[1], [0], [0], [1], [0, 0, 1, 1], [], []>} : vector<8x48xbf16>, vector<48x256xbf16>, vector<8x256xf32> -> vector<8x256xf32>
    %c0_3 = arith.constant 0 : index
    %c0_4 = arith.constant 0 : index
    %3 = vector.load %arg3[%c0_3, %c0_4] : memref<1x256xf32, #tpu.memory_space<vmem>>, vector<1x256xf32>
    %4 = vector.broadcast %3 : vector<1x256xf32> to vector<8x256xf32>
    %5 = arith.addf %2, %4 : vector<8x256xf32>
    %cst_5 = arith.constant 0.000000e+00 : f32
    %6 = vector.broadcast %cst_5 : f32 to vector<8x256xf32>
    %7 = arith.maximumf %5, %6 : vector<8x256xf32>
    %8 = arith.truncf %7 : vector<8x256xf32> to vector<8x256xbf16>
    %c0_6 = arith.constant 0 : index
    %c0_7 = arith.constant 0 : index
    %9 = vector.load %arg4[%c0_6, %c0_7] : memref<256x128xbf16, #tpu.memory_space<vmem>>, vector<256x128xbf16>
    %cst_8 = arith.constant dense<0.000000e+00> : vector<8x128xf32>
    %10 = tpu.matmul %8, %9, %cst_8 {dimension_numbers = #tpu.dot_dimension_numbers<[1], [0], [0], [1], [0, 0, 1, 1], [], []>} : vector<8x256xbf16>, vector<256x128xbf16>, vector<8x128xf32> -> vector<8x128xf32>
    %c0_9 = arith.constant 0 : index
    %c0_10 = arith.constant 0 : index
    %11 = vector.load %arg5[%c0_9, %c0_10] : memref<1x128xf32, #tpu.memory_space<vmem>>, vector<1x128xf32>
    %12 = vector.broadcast %11 : vector<1x128xf32> to vector<8x128xf32>
    %13 = arith.addf %10, %12 : vector<8x128xf32>
    %14 = arith.truncf %13 : vector<8x128xf32> to vector<8x128xbf16>
    %c0_11 = arith.constant 0 : index
    %c0_12 = arith.constant 0 : index
    %15 = vector.load %arg6[%c0_11, %c0_12] : memref<8x128xbf16, #tpu.memory_space<vmem>>, vector<8x128xbf16>
    tpu.vector_store %arg6[%c0_11, %c0_12], %14 {strides = array<i32>} : memref<8x128xbf16, #tpu.memory_space<vmem>>, vector<8x128xbf16>,
    return
  }
  func.func @transform_0(%arg0: i32) -> (i32, i32) {
    %c0_i32 = arith.constant 0 : i32
    %c0_i32_0 = arith.constant 0 : i32
    return %arg0, %c0_i32 : i32, i32
  }
  func.func @transform_1(%arg0: i32) -> (i32, i32) {
    %c0_i32 = arith.constant 0 : i32
    %c0_i32_0 = arith.constant 0 : i32
    %c0_i32_1 = arith.constant 0 : i32
    return %c0_i32, %c0_i32_0 : i32, i32
  }
  func.func @transform_2(%arg0: i32) -> (i32, i32) {
    %c0_i32 = arith.constant 0 : i32
    %c0_i32_0 = arith.constant 0 : i32
    %c0_i32_1 = arith.constant 0 : i32
    return %c0_i32, %c0_i32_0 : i32, i32
  }
  func.func @transform_3(%arg0: i32) -> (i32, i32) {
    %c0_i32 = arith.constant 0 : i32
    %c0_i32_0 = arith.constant 0 : i32
    %c0_i32_1 = arith.constant 0 : i32
    return %c0_i32, %c0_i32_0 : i32, i32
  }
  func.func @transform_4(%arg0: i32) -> (i32, i32) {
    %c0_i32 = arith.constant 0 : i32
    %c0_i32_0 = arith.constant 0 : i32
    %c0_i32_1 = arith.constant 0 : i32
    return %c0_i32, %c0_i32_0 : i32, i32
  }
  func.func @transform_5(%arg0: i32) -> (i32, i32) {
    %c0_i32 = arith.constant 0 : i32
    %c0_i32_0 = arith.constant 0 : i32
    return %arg0, %c0_i32 : i32, i32
  }
}

</mosaic_0001>

<llo_original>
// kernel: tpu_custom_call.1
$region0: #{tpu_custom_call.1}
  #allocation0 [shape = 'u32[]', space=smem, size = 0x4, offset = 0x4, fixed_abs, tag = 'smem constant byte address 0x4 - core index']
  #allocation1 [shape = 'u32[144,128]{1,0:T(1,128)}', space=vmem, size = 0x12000, scoped, tag = 'internal scratch']
  %s0 = inlined_call_operand.hbm [shape: bf16[8,48], index: 0, kind: input, shape index: {}]
  %s1 = inlined_call_operand.hbm [shape: bf16[48,256], index: 1, kind: input, shape index: {}]
  %s2 = inlined_call_operand.vmem [shape: f32[1,256], index: 2, kind: input, shape index: {}]
  %s3 = inlined_call_operand.hbm [shape: bf16[256,128], index: 3, kind: input, shape index: {}]
  %s4 = inlined_call_operand.vmem [shape: f32[1,128], index: 4, kind: input, shape index: {}]
  %s5 = inlined_call_operand.hbm [shape: bf16[8,128], index: 5, kind: output, shape index: {}]
  %s6 = sld [smem:[#allocation0]]
  $region42: #{tpu_custom_call.1} parent=0
    _
  %s8 = ssub.s32 1, %s6
  %s9 = scalar_select 0, %s8, %s6
  $region1: #{tpu_custom_call.1} parent=0
    #allocation2 [shape = 'u8[2048]{0}', space=vmem, size = 0x800, scoped, tag = 'input window, operand 0, single buffered']
    #allocation3 [shape = 's32[1]{0}', space=sflag, size = 0x4, scoped, tag = 'scoped memory for tpu_custom_call.1']
    #allocation4 [shape = 's32[1]{0}', space=sflag, size = 0x4, scoped, tag = 'scoped memory for tpu_custom_call.1']
    #allocation5 [shape = 'u8[24576]{0}', space=vmem, size = 0x6000, scoped, tag = 'input window, operand 1, single buffered']
    #allocation6 [shape = 's32[1]{0}', space=sflag, size = 0x4, scoped, tag = 'scoped memory for tpu_custom_call.1']
    #allocation7 [shape = 'u8[65536]{0}', space=vmem, size = 0x10000, scoped, tag = 'input window, operand 3, single buffered']
    #allocation8 [shape = 'u8[2048]{0}', space=vmem, size = 0x800, scoped, tag = 'output window, operand 0, single buffered']
    %10 = vsyncpa [#allocation3], 0
    %11 = vsyncpa [#allocation6], 0
    %12 = vsyncpa [#allocation4], 0
    // Predicated region
    $region2: #{tpu_custom_call.1} parent=1 // pred_check
      _
    $region3: #{tpu_custom_call.1} parent=1 // pred_check_branch
      %14 = sbr.rel (0) target = $region5
    $region4: #{tpu_custom_call.1} parent=1 // pred_region
      %s16 = ssub.s32 64, 64
      %17 = vsyncadd [#allocation3], %s16
      %s19 = sshll.u32 [#allocation2], 4
      %s20 = int_to_ptr.vmem [resolvable:$true] %s19
      %22 = dma.hbm_to_vmem [thread:$0]  %s0, 64, %s20, [#allocation3]
    $region5: #{tpu_custom_call.1} parent=1 // pred_fallthru
      _
    // Predicated region
    $region6: #{tpu_custom_call.1} parent=1 // pred_check
      _
    $region7: #{tpu_custom_call.1} parent=1 // pred_check_branch
      %24 = sbr.rel (0) target = $region9
    $region8: #{tpu_custom_call.1} parent=1 // pred_region
      %s26 = ssub.s32 768, 768
      %27 = vsyncadd [#allocation6], %s26
      %s28 = sshll.u32 [#allocation5], 4
      %s29 = int_to_ptr.vmem [resolvable:$true] %s28
      %34 = dma.hbm_to_vmem [thread:$0]  %s1, 768, %s29, [#allocation6], 128, 128, 8
    $region9: #{tpu_custom_call.1} parent=1 // pred_fallthru
      _
    // Predicated region
    $region10: #{tpu_custom_call.1} parent=1 // pred_check
      _
    $region11: #{tpu_custom_call.1} parent=1 // pred_check_branch
      %36 = sbr.rel (0) target = $region13
    $region12: #{tpu_custom_call.1} parent=1 // pred_region
      _
    $region13: #{tpu_custom_call.1} parent=1 // pred_fallthru
      _
    // Predicated region
    $region14: #{tpu_custom_call.1} parent=1 // pred_check
      _
    $region15: #{tpu_custom_call.1} parent=1 // pred_check_branch
      %38 = sbr.rel (0) target = $region17
    $region16: #{tpu_custom_call.1} parent=1 // pred_region
      %s40 = ssub.s32 2048, 2048
      %41 = vsyncadd [#allocation6], %s40
      %s42 = sshll.u32 [#allocation7], 4
      %s43 = int_to_ptr.vmem [resolvable:$true] %s42
      %48 = dma.hbm_to_vmem [thread:$0]  %s3, 2048, %s43, [#allocation6], 64, 64, 4
    $region17: #{tpu_custom_call.1} parent=1 // pred_fallthru
      _
    // Predicated region
    $region18: #{tpu_custom_call.1} parent=1 // pred_check
      _
    $region19: #{tpu_custom_call.1} parent=1 // pred_check_branch
      %50 = sbr.rel (0) target = $region21
    $region20: #{tpu_custom_call.1} parent=1 // pred_region
      _
    $region21: #{tpu_custom_call.1} parent=1 // pred_fallthru
      _
    // Predicated region
    $region22: #{tpu_custom_call.1} parent=1 // pred_check
      _
    $region23: #{tpu_custom_call.1} parent=1 // pred_check_branch
      %52 = sbr.rel (0) target = $region25
    $region24: #{tpu_custom_call.1} parent=1 // pred_region
      %53 = dma.done [#allocation3], 64
    $region25: #{tpu_custom_call.1} parent=1 // pred_fallthru
      _
    // Predicated region
    $region26: #{tpu_custom_call.1} parent=1 // pred_check
      _
    $region27: #{tpu_custom_call.1} parent=1 // pred_check_branch
      %55 = sbr.rel (0) target = $region29
    $region28: #{tpu_custom_call.1} parent=1 // pred_region
      %56 = dma.done [#allocation6], 768
    $region29: #{tpu_custom_call.1} parent=1 // pred_fallthru
      _
    // Predicated region
    $region30: #{tpu_custom_call.1} parent=1 // pred_check
      _
    $region31: #{tpu_custom_call.1} parent=1 // pred_check_branch
      %58 = sbr.rel (0) target = $region33
    $region32: #{tpu_custom_call.1} parent=1 // pred_region
      %59 = dma.done [#allocation6], 2048
    $region33: #{tpu_custom_call.1} parent=1 // pred_fallthru
      _
    %v61 = vld [vmem:[#allocation2] sm:$0xf]
    %v62 = vld [vmem:[#allocation5] sm:$0xff]
    %v63 = vld [vmem:[#allocation5 + $0x8] sm:$0xff]
    %v64 = vld [vmem:[#allocation5 + $0x10] sm:$0xff]
    %v65 = vld [vmem:[#allocation5 + $0x18] sm:$0xff]
    %v66 = vld [vmem:[#allocation5 + $0x20] sm:$0xff]
    %v67 = vld [vmem:[#allocation5 + $0x28] sm:$0xff]
    %v68 = vld [vmem:[%s2] sm:$0x3]
    %v70 = vlaneseq
    %v71 = vshrl.u32 %v70, 7
    %v72 = vsub.s32 0, %v71
    %v73 = vrot.slane %v68, %v72
    %v74 = vlaneseq
    %v75 = vshrl.u32 %v74, 7
    %v76 = vsub.s32 1, %v75
    %v77 = vrot.slane %v68, %v76
    %v86 = vunpack.c.l.b16 %v62
    %v87 = vunpack.c.h.b16 %v62
    %v88 = vunpack.c.l.b16 %v63
    %v89 = vunpack.c.h.b16 %v63
    %v90 = vunpack.c.l.b16 %v64
    %v91 = vunpack.c.h.b16 %v64
    %v92 = vunpack.c.l.b16 %v65
    %v93 = vunpack.c.h.b16 %v65
    %v94 = vunpack.c.l.b16 %v66
    %v95 = vunpack.c.h.b16 %v66
    %v96 = vunpack.c.l.b16 %v67
    %v97 = vunpack.c.h.b16 %v67
    %v98 = vpack.c.b16 %v88, %v86
    %v99 = vpack.c.b16 %v89, %v87
    %v100 = vpack.c.b16 %v92, %v90
    %v101 = vpack.c.b16 %v93, %v91
    %v102 = vpack.c.b16 %v96, %v94
    %v103 = vpack.c.b16 %v97, %v95
    %vm110 = vcmask 392192
    %v112 = vsel %vm110, %v61, 0
    %114 = vmatprep.subr.bf16.mxu0 0
    %115 = vmatpush1.bf16.msra.mxu0 0
    %116 = vmatprep.subr.bf16.mxu0 0
    %117 = vmatpush1.bf16.msra.mxu0 0
    %118 = vmatprep.subr.bf16.mxu0 0
    %119 = vmatpush1.bf16.msra.mxu0 0
    %120 = vmatprep.subr.bf16.mxu0 0
    %121 = vmatpush1.bf16.msra.mxu0 0
    %122 = vmatprep.subr.bf16.mxu0 0
    %123 = vmatpush1.bf16.msra.mxu0 0
    %124 = vmatprep.subr.bf16.mxu0 %v103
    %125 = vmatpush1.bf16.msra.mxu0 %v102
    %126 = vmatprep.subr.bf16.mxu0 %v101
    %127 = vmatpush1.bf16.msra.mxu0 %v100
    %128 = vmatprep.subr.bf16.mxu0 %v99
    %129 = vmatpush1.bf16.msra.mxu0 %v98
    %130 = vmatprep.subr.bf16.mxu0 0
    %131 = vmatpush2.bf16.msra.mxu0 0
    %132 = vmatprep.subr.bf16.mxu0 0
    %133 = vmatpush2.bf16.msra.mxu0 0
    %134 = vmatprep.subr.bf16.mxu0 0
    %135 = vmatpush2.bf16.msra.mxu0 0
    %136 = vmatprep.subr.bf16.mxu0 0
    %137 = vmatpush2.bf16.msra.mxu0 0
    %138 = vmatprep.subr.bf16.mxu0 0
    %139 = vmatpush2.bf16.msra.mxu0 0
    %140 = vmatprep.subr.bf16.mxu0 0
    %141 = vmatpush2.bf16.msra.mxu0 0
    %142 = vmatprep.subr.bf16.mxu0 0
    %143 = vmatpush2.bf16.msra.mxu0 0
    %144 = vmatprep.subr.bf16.mxu0 0
    %145 = vmatpush2.bf16.msra.mxu0 0
    %146 = vmatprep.mubr.bf16.mxu0 0
    %147 = vmatmul.mubr.bf16.gmra.mxu0 %v112
    %v148 = vpop.f32.mrf.mxu0
    %v149 = vadd.f32 %v73, %v148
    %v150 = vpop.f32.mrf.mxu0
    %v151 = vadd.f32 %v77, %v150
    %v152 = vpop.f32.mrf.mxu0
    %v153 = vpop.f32.mrf.mxu0
    %154 = vdwg.mxu0
    %v155 = vmax.f32 %v149, 0.0
    %v156 = vmax.f32 %v151, 0.0
    %v157 = vpack.c.bf16 %v155, %v155
    %v158 = vpack.c.bf16 %v156, %v156
    %v159 = vld [vmem:[#allocation7] sm:$0xf]
    %v160 = vld [vmem:[#allocation7 + $0x4] sm:$0xf]
    %v161 = vld [vmem:[#allocation7 + $0x8] sm:$0xf]
    %v162 = vld [vmem:[#allocation7 + $0xc] sm:$0xf]
    %v163 = vld [vmem:[#allocation7 + $0x10] sm:$0xf]
    %v164 = vld [vmem:[#allocation7 + $0x14] sm:$0xf]
    %v165 = vld [vmem:[#allocation7 + $0x18] sm:$0xf]
    %v166 = vld [vmem:[#allocation7 + $0x1c] sm:$0xf]
    %v167 = vld [vmem:[#allocation7 + $0x20] sm:$0xf]
    %v168 = vld [vmem:[#allocation7 + $0x24] sm:$0xf]
    %v169 = vld [vmem:[#allocation7 + $0x28] sm:$0xf]
    %v170 = vld [vmem:[#allocation7 + $0x2c] sm:$0xf]
    %v171 = vld [vmem:[#allocation7 + $0x30] sm:$0xf]
    %v172 = vld [vmem:[#allocation7 + $0x34] sm:$0xf]
    %v173 = vld [vmem:[#allocation7 + $0x38] sm:$0xf]
    %v174 = vld [vmem:[#allocation7 + $0x3c] sm:$0xf]
    %v175 = vld [vmem:[#allocation7 + $0x40] sm:$0xf]
    %v176 = vld [vmem:[#allocation7 + $0x44] sm:$0xf]
    %v177 = vld [vmem:[#allocation7 + $0x48] sm:$0xf]
    %v178 = vld [vmem:[#allocation7 + $0x4c] sm:$0xf]
    %v179 = vld [vmem:[#allocation7 + $0x50] sm:$0xf]
    %v180 = vld [vmem:[#allocation7 + $0x54] sm:$0xf]
    %v181 = vld [vmem:[#allocation7 + $0x58] sm:$0xf]
    %v182 = vld [vmem:[#allocation7 + $0x5c] sm:$0xf]
    %v183 = vld [vmem:[#allocation7 + $0x60] sm:$0xf]
    %v184 = vld [vmem:[#allocation7 + $0x64] sm:$0xf]
    %v185 = vld [vmem:[#allocation7 + $0x68] sm:$0xf]
    %v186 = vld [vmem:[#allocation7 + $0x6c] sm:$0xf]
    %v187 = vld [vmem:[#allocation7 + $0x70] sm:$0xf]
    %v188 = vld [vmem:[#allocation7 + $0x74] sm:$0xf]
    %v189 = vld [vmem:[#allocation7 + $0x78] sm:$0xf]
    %v190 = vld [vmem:[#allocation7 + $0x7c] sm:$0xf]
    %v191 = vld [vmem:[%s4] sm:$0x1]
    %v193 = vlaneseq
    %v194 = vshrl.u32 %v193, 7
    %v195 = vsub.s32 0, %v194
    %v196 = vrot.slane %v191, %v195
    %v230 = vunpack.c.l.b16 %v159
    %v231 = vunpack.c.l.b16 %v160
    %v232 = vunpack.c.l.b16 %v161
    %v233 = vunpack.c.l.b16 %v162
    %v234 = vunpack.c.l.b16 %v163
    %v235 = vunpack.c.l.b16 %v164
    %v236 = vunpack.c.l.b16 %v165
    %v237 = vunpack.c.l.b16 %v166
    %v238 = vunpack.c.l.b16 %v167
    %v239 = vunpack.c.l.b16 %v168
    %v240 = vunpack.c.l.b16 %v169
    %v241 = vunpack.c.l.b16 %v170
    %v242 = vunpack.c.l.b16 %v171
    %v243 = vunpack.c.l.b16 %v172
    %v244 = vunpack.c.l.b16 %v173
    %v245 = vunpack.c.l.b16 %v174
    %v246 = vunpack.c.l.b16 %v175
    %v247 = vunpack.c.l.b16 %v176
    %v248 = vunpack.c.l.b16 %v177
    %v249 = vunpack.c.l.b16 %v178
    %v250 = vunpack.c.l.b16 %v179
    %v251 = vunpack.c.l.b16 %v180
    %v252 = vunpack.c.l.b16 %v181
    %v253 = vunpack.c.l.b16 %v182
    %v254 = vunpack.c.l.b16 %v183
    %v255 = vunpack.c.l.b16 %v184
    %v256 = vunpack.c.l.b16 %v185
    %v257 = vunpack.c.l.b16 %v186
    %v258 = vunpack.c.l.b16 %v187
    %v259 = vunpack.c.l.b16 %v188
    %v260 = vunpack.c.l.b16 %v189
    %v261 = vunpack.c.l.b16 %v190
    %v262 = vpack.c.b16 %v231, %v230
    %v263 = vpack.c.b16 %v233, %v232
    %v264 = vpack.c.b16 %v235, %v234
    %v265 = vpack.c.b16 %v237, %v236
    %v266 = vpack.c.b16 %v239, %v238
    %v267 = vpack.c.b16 %v241, %v240
    %v268 = vpack.c.b16 %v243, %v242
    %v269 = vpack.c.b16 %v245, %v244
    %v270 = vpack.c.b16 %v247, %v246
    %v271 = vpack.c.b16 %v249, %v248
    %v272 = vpack.c.b16 %v251, %v250
    %v273 = vpack.c.b16 %v253, %v252
    %v274 = vpack.c.b16 %v255, %v254
    %v275 = vpack.c.b16 %v257, %v256
    %v276 = vpack.c.b16 %v259, %v258
    %v277 = vpack.c.b16 %v261, %v260
    %294 = vmatprep.subr.bf16.mxu0 0
    %295 = vmatpush1.bf16.msra.mxu0 %v269
    %296 = vmatprep.subr.bf16.mxu0 0
    %297 = vmatpush1.bf16.msra.mxu0 %v268
    %298 = vmatprep.subr.bf16.mxu0 0
    %299 = vmatpush1.bf16.msra.mxu0 %v267
    %300 = vmatprep.subr.bf16.mxu0 0
    %301 = vmatpush1.bf16.msra.mxu0 %v266
    %302 = vmatprep.subr.bf16.mxu0 0
    %303 = vmatpush1.bf16.msra.mxu0 %v265
    %304 = vmatprep.subr.bf16.mxu0 0
    %305 = vmatpush1.bf16.msra.mxu0 %v264
    %306 = vmatprep.subr.bf16.mxu0 0
    %307 = vmatpush1.bf16.msra.mxu0 %v263
    %308 = vmatprep.subr.bf16.mxu0 0
    %309 = vmatpush1.bf16.msra.mxu0 %v262
    %310 = vmatprep.subr.bf16.mxu0 0
    %311 = vmatpush2.bf16.msra.mxu0 %v277
    %312 = vmatprep.subr.bf16.mxu0 0
    %313 = vmatpush2.bf16.msra.mxu0 %v276
    %314 = vmatprep.subr.bf16.mxu0 0
    %315 = vmatpush2.bf16.msra.mxu0 %v275
    %316 = vmatprep.subr.bf16.mxu0 0
    %317 = vmatpush2.bf16.msra.mxu0 %v274
    %318 = vmatprep.subr.bf16.mxu0 0
    %319 = vmatpush2.bf16.msra.mxu0 %v273
    %320 = vmatprep.subr.bf16.mxu0 0
    %321 = vmatpush2.bf16.msra.mxu0 %v272
    %322 = vmatprep.subr.bf16.mxu0 0
    %323 = vmatpush2.bf16.msra.mxu0 %v271
    %324 = vmatprep.subr.bf16.mxu0 0
    %325 = vmatpush2.bf16.msra.mxu0 %v270
    %326 = vmatprep.mubr.bf16.mxu0 %v158
    %327 = vmatmul.mubr.bf16.gmra.mxu0 %v157
    %v328 = vpop.f32.mrf.mxu0
    %v329 = vadd.f32 %v196, %v328
    %v330 = vpop.f32.mrf.mxu0
    %v331 = vpop.f32.mrf.mxu0
    %v332 = vpop.f32.mrf.mxu0
    %333 = vdwg.mxu0
    %v334 = vpack.c.bf16 %v329, %v329
    %335 = vst [vmem:[#allocation8] sm:$0xf] %v334
    // Predicated region
    $region34: #{tpu_custom_call.1} parent=1 // pred_check
      _
    $region35: #{tpu_custom_call.1} parent=1 // pred_check_branch
      %337 = sbr.rel (0) target = $region37
    $region36: #{tpu_custom_call.1} parent=1 // pred_region
      %s339 = ssub.s32 64, 64
      %340 = vsyncadd [#allocation4], %s339
      %s342 = sshll.u32 [#allocation8], 4
      %s343 = int_to_ptr.vmem [resolvable:$true] %s342
      %345 = dma.vmem_to_hbm [thread:$0]  %s343, 64, %s5, [#allocation4]
    $region37: #{tpu_custom_call.1} parent=1 // pred_fallthru
      _
    // Predicated region
    $region38: #{tpu_custom_call.1} parent=1 // pred_check
      _
    $region39: #{tpu_custom_call.1} parent=1 // pred_check_branch
      %347 = sbr.rel (0) target = $region41
    $region40: #{tpu_custom_call.1} parent=1 // pred_region
      %348 = dma.done [#allocation4], 64
    $region41: #{tpu_custom_call.1} parent=1 // pred_fallthru
      _
    %349 = vsyncpa [#allocation3], 1
    %350 = vsyncpa [#allocation6], 1
    %351 = vsyncpa [#allocation4], 1

</llo_original>
